<compile_context>
chip_gen: v6e
topology: v6e:2x2x1
jax: 0.10.0
libtpu: 0.0.40
codegen_flags: <defaults>
</compile_context>

<pallas_src>
import jax
import jax.numpy as jnp
from jax.experimental import pallas as pl
from jax.experimental.pallas import tpu as pltpu


def lstm_classifier_kernel(x_ref, wx_ref, b_ref, wh_ref, wl_ref, bl_ref,
                           y_ref, xproj_sc):
    """Single-invocation kernel (no grid).

    x_ref   : (T*B, E)   time-major inputs, leading dims pre-flattened
    wx_ref  : (E, 4H)    W_ih^T, gate order [i, f, g, o]; g columns pre-scaled by 2
    b_ref   : (1, 4H)    b_ih + b_hh (folded); g columns pre-scaled by 2
    wh_ref  : (H, 4H)    W_hh^T; g columns pre-scaled by 2
    wl_ref  : (H, L)     hidden2label weight^T
    bl_ref  : (1, L)     hidden2label bias
    y_ref   : (B, L)     output logits
    xproj_sc: (T*B, 4H)  VMEM scratch for the hoisted x-projection
    """
    TB, _ = x_ref.shape
    H, G = wh_ref.shape            # G == 4*H
    B, _ = y_ref.shape
    T = TB // B

    # ---- Prologue (runs once): hoist the non-recurrent x-side projection out of the
    # time loop as one lane-dense (T*B, E) @ (E, 4H) matmul, biases folded in.
    xproj_sc[...] = (
        jnp.dot(x_ref[...], wx_ref[...], preferred_element_type=jnp.float32)
        + b_ref[...]
    )

    def step(t, carry):
        c, h = carry
        row = pl.multiple_of(t * B, B)
        # One fused MXU op for all four gates of the recurrent path.
        # wh is read from VMEM each step (loop-invariant vld is free here; hoisting
        # it into vregs pins 16 of 64 and risks spills under the unrolled loop).
        gates = xproj_sc[pl.ds(row, B), :] + jnp.dot(
            h, wh_ref[...], preferred_element_type=jnp.float32)      # (B, 4H)
        # Single EUP pass over the whole (B, 4H) tile. The g-gate pre-inputs were
        # scaled by 2 on the host, so tanh(x) = 2*sigmoid(2x) - 1 recovers g with
        # one VPU mul+sub instead of a second full-tile tanh dispatch.
        sg = jax.nn.sigmoid(gates)
        i_g = sg[:, 0 * H:1 * H]
        f_g = sg[:, 1 * H:2 * H]
        g_g = 2.0 * sg[:, 2 * H:3 * H] - 1.0
        o_g = sg[:, 3 * H:4 * H]
        c_new = f_g * c + i_g * g_g
        h_new = o_g * jnp.tanh(c_new)          # only remaining tanh: (B, H)
        return (c_new, h_new)

    c0 = jnp.zeros((B, H), jnp.float32)
    h0 = jnp.zeros((B, H), jnp.float32)
    _, h_T = jax.lax.fori_loop(0, T, step, (c0, h0), unroll=True)

    # ---- Fused classifier head: y = h_T @ W_label^T + b_label.
    y_ref[...] = (
        jnp.dot(h_T, wl_ref[...], preferred_element_type=jnp.float32)
        + bl_ref[...]
    )


def lstm_classifier_forward(x, wx, b, wh, wl, bl):
    """x: (T, B, E) f32; weights with g-gate columns pre-scaled by 2.

    Returns logits (B, L) f32.
    """
    T, B, E = x.shape
    H, G = wh.shape
    L = wl.shape[1]
    x2d = x.reshape(T * B, E)      # flatten outside the kernel (free, layout-preserving)

    # No grid: single invocation, every operand placed whole in VMEM exactly once
    # (no double-buffering of single-use inputs, no per-step grid overhead).
    return pl.pallas_call(
        lstm_classifier_kernel,
        out_shape=jax.ShapeDtypeStruct((B, L), jnp.float32),
        scratch_shapes=[
            pltpu.VMEM((T * B, G), jnp.float32),   # hoisted x-projection
        ],
    )(x2d, wx, b, wh, wl, bl)


def lstm_classifier_reference(x, wx, b, wh, wl, bl):
    """Pure-JAX reference with the original (un-scaled) weights and exact LSTM math."""
    T, B, E = x.shape
    H = wh.shape[0]

    def step(carry, x_t):
        c, h = carry
        gates = x_t @ wx + b + h @ wh
        i_g = jax.nn.sigmoid(gates[:, 0:H])
        f_g = jax.nn.sigmoid(gates[:, H:2 * H])
        g_g = jnp.tanh(gates[:, 2 * H:3 * H])
        o_g = jax.nn.sigmoid(gates[:, 3 * H:4 * H])
        c_new = f_g * c + i_g * g_g
        h_new = o_g * jnp.tanh(c_new)
        return (c_new, h_new), h_new

    init = (jnp.zeros((B, H), jnp.float32), jnp.zeros((B, H), jnp.float32))
    (_, h_T), _ = jax.lax.scan(step, init, x)
    return h_T @ wl + bl


if __name__ == "__main__":
    # Small shapes implied by the module: seq=8, batch=8 (fills vreg sublanes),
    # embedding_dim=32, hidden_dim=32, label_size=8.
    T, B = 8, 8
    E, H, L = 32, 32, 8

    key = jax.random.PRNGKey(0)
    k_x, k_wih, k_whh, k_bih, k_bhh, k_wl, k_bl = jax.random.split(key, 7)

    # PyTorch-style init: nn.LSTM / nn.Linear params ~ U(-1/sqrt(H), 1/sqrt(H)).
    kh = 1.0 / jnp.sqrt(jnp.float32(H))
    w_ih = jax.random.uniform(k_wih, (4 * H, E), jnp.float32, -kh, kh)   # torch weight_ih_l0
    w_hh = jax.random.uniform(k_whh, (4 * H, H), jnp.float32, -kh, kh)   # torch weight_hh_l0
    b_ih = jax.random.uniform(k_bih, (4 * H,), jnp.float32, -kh, kh)
    b_hh = jax.random.uniform(k_bhh, (4 * H,), jnp.float32, -kh, kh)
    w_label = jax.random.uniform(k_wl, (L, H), jnp.float32, -kh, kh)     # hidden2label
    b_label = jax.random.uniform(k_bl, (L,), jnp.float32, -kh, kh)

    # Kernel-friendly layout: pre-transposed weights, fused LSTM bias.
    wx = w_ih.T                          # (E, 4H)
    wh = w_hh.T                          # (H, 4H)
    b = (b_ih + b_hh).reshape(1, 4 * H)  # (1, 4H)
    wl = w_label.T                       # (H, L)
    bl = b_label.reshape(1, L)           # (1, L)

    # Pre-scale the g-gate (candidate) columns by 2 so the kernel can use
    # tanh(x) = 2*sigmoid(2x) - 1 and issue a single sigmoid per step.
    gscale = jnp.ones((4 * H,), jnp.float32).at[2 * H:3 * H].set(2.0)
    wx_k = wx * gscale
    wh_k = wh * gscale
    b_k = b * gscale

    # Random "embeddings" (the module's forward feeds random floats to the LSTM).
    x = jax.random.normal(k_x, (T, B, E), jnp.float32)

    y = jax.block_until_ready(lstm_classifier_forward(x, wx_k, b_k, wh_k, wl, bl))
    ref = jax.block_until_ready(lstm_classifier_reference(x, wx, b, wh, wl, bl))

    assert y.shape == (B, L)
    assert jnp.allclose(y, ref, rtol=1e-5, atol=1e-5), "Pallas LSTMClassifier mismatch vs reference"

    print("KERNEL_OK")
</pallas_src>

<mosaic_0001>
module attributes {stable_mosaic.version = 11 : i64} {
  func.func @lstm_classifier_kernel(%arg0: memref<64x32xf32, #tpu.memory_space<vmem>>, %arg1: memref<32x128xf32, #tpu.memory_space<vmem>>, %arg2: memref<1x128xf32, #tpu.memory_space<vmem>>, %arg3: memref<32x128xf32, #tpu.memory_space<vmem>>, %arg4: memref<32x8xf32, #tpu.memory_space<vmem>>, %arg5: memref<1x8xf32, #tpu.memory_space<vmem>>, %arg6: memref<8x8xf32, #tpu.memory_space<vmem>>, %arg7: memref<64x128xf32, #tpu.memory_space<vmem>>) attributes {dimension_semantics = [], scalar_prefetch = 0 : i64, scratch_operands = 1 : i64, tpu.core_type = #tpu.core_type<tc>} {
    %c0 = arith.constant 0 : index
    %c0_0 = arith.constant 0 : index
    %0 = vector.load %arg0[%c0, %c0_0] : memref<64x32xf32, #tpu.memory_space<vmem>>, vector<64x32xf32>
    %c0_1 = arith.constant 0 : index
    %c0_2 = arith.constant 0 : index
    %1 = vector.load %arg1[%c0_1, %c0_2] : memref<32x128xf32, #tpu.memory_space<vmem>>, vector<32x128xf32>
    %cst = arith.constant dense<0.000000e+00> : vector<64x128xf32>
    %2 = tpu.matmul %0, %1, %cst {dimension_numbers = #tpu.dot_dimension_numbers<[1], [0], [0], [1], [0, 0, 1, 1], [], []>} : vector<64x32xf32>, vector<32x128xf32>, vector<64x128xf32> -> vector<64x128xf32>
    %c0_3 = arith.constant 0 : index
    %c0_4 = arith.constant 0 : index
    %3 = vector.load %arg2[%c0_3, %c0_4] : memref<1x128xf32, #tpu.memory_space<vmem>>, vector<1x128xf32>
    %4 = vector.broadcast %3 : vector<1x128xf32> to vector<64x128xf32>
    %5 = arith.addf %2, %4 : vector<64x128xf32>
    %c0_5 = arith.constant 0 : index
    %c0_6 = arith.constant 0 : index
    %6 = vector.load %arg7[%c0_5, %c0_6] : memref<64x128xf32, #tpu.memory_space<vmem>>, vector<64x128xf32>
    tpu.vector_store %arg7[%c0_5, %c0_6], %5 {strides = array<i32>} : memref<64x128xf32, #tpu.memory_space<vmem>>, vector<64x128xf32>,
    %cst_7 = arith.constant 0.000000e+00 : f32
    %7 = vector.broadcast %cst_7 : f32 to vector<8x32xf32>
    %cst_8 = arith.constant 0.000000e+00 : f32
    %8 = vector.broadcast %cst_8 : f32 to vector<8x32xf32>
    %c0_i32 = arith.constant 0 : i32
    %c8_i32 = arith.constant 8 : i32
    %9 = arith.muli %c0_i32, %c8_i32 : i32
    %10 = tpu.assume_multiple %9, 8 : i32
    %11 = arith.index_cast %10 : i32 to index
    %c0_9 = arith.constant 0 : index
    %12 = vector.load %arg7[%11, %c0_9] : memref<64x128xf32, #tpu.memory_space<vmem>>, vector<8x128xf32>
    %c0_10 = arith.constant 0 : index
    %c0_11 = arith.constant 0 : index
    %13 = vector.load %arg3[%c0_10, %c0_11] : memref<32x128xf32, #tpu.memory_space<vmem>>, vector<32x128xf32>
    %cst_12 = arith.constant dense<0.000000e+00> : vector<8x128xf32>
    %14 = tpu.matmul %8, %13, %cst_12 {dimension_numbers = #tpu.dot_dimension_numbers<[1], [0], [0], [1], [0, 0, 1, 1], [], []>} : vector<8x32xf32>, vector<32x128xf32>, vector<8x128xf32> -> vector<8x128xf32>
    %15 = arith.addf %12, %14 : vector<8x128xf32>
    %16 = arith.negf %15 : vector<8x128xf32>
    %17 = math.exp %16 : vector<8x128xf32>
    %cst_13 = arith.constant 1.000000e+00 : f32
    %18 = vector.broadcast %cst_13 : f32 to vector<8x128xf32>
    %19 = arith.addf %18, %17 : vector<8x128xf32>
    %20 = arith.divf %18, %19 : vector<8x128xf32>
    %21 = vector.extract_strided_slice %20 {offsets = [0, 0], sizes = [8, 32], strides = [1, 1]} : vector<8x128xf32> to vector<8x32xf32>
    %22 = vector.extract_strided_slice %20 {offsets = [0, 32], sizes = [8, 32], strides = [1, 1]} : vector<8x128xf32> to vector<8x32xf32>
    %23 = vector.extract_strided_slice %20 {offsets = [0, 64], sizes = [8, 32], strides = [1, 1]} : vector<8x128xf32> to vector<8x32xf32>
    %cst_14 = arith.constant 2.000000e+00 : f32
    %24 = vector.broadcast %cst_14 : f32 to vector<8x32xf32>
    %25 = arith.mulf %24, %23 : vector<8x32xf32>
    %cst_15 = arith.constant 1.000000e+00 : f32
    %26 = vector.broadcast %cst_15 : f32 to vector<8x32xf32>
    %27 = arith.subf %25, %26 : vector<8x32xf32>
    %28 = vector.extract_strided_slice %20 {offsets = [0, 96], sizes = [8, 32], strides = [1, 1]} : vector<8x128xf32> to vector<8x32xf32>
    %29 = arith.mulf %22, %7 : vector<8x32xf32>
    %30 = arith.mulf %21, %27 : vector<8x32xf32>
    %31 = arith.addf %29, %30 : vector<8x32xf32>
    %32 = math.tanh %31 : vector<8x32xf32>
    %33 = arith.mulf %28, %32 : vector<8x32xf32>
    %c1_i32 = arith.constant 1 : i32
    %c8_i32_16 = arith.constant 8 : i32
    %34 = arith.muli %c1_i32, %c8_i32_16 : i32
    %35 = tpu.assume_multiple %34, 8 : i32
    %36 = arith.index_cast %35 : i32 to index
    %c0_17 = arith.constant 0 : index
    %37 = vector.load %arg7[%36, %c0_17] : memref<64x128xf32, #tpu.memory_space<vmem>>, vector<8x128xf32>
    %c0_18 = arith.constant 0 : index
    %c0_19 = arith.constant 0 : index
    %38 = vector.load %arg3[%c0_18, %c0_19] : memref<32x128xf32, #tpu.memory_space<vmem>>, vector<32x128xf32>
    %cst_20 = arith.constant dense<0.000000e+00> : vector<8x128xf32>
    %39 = tpu.matmul %33, %38, %cst_20 {dimension_numbers = #tpu.dot_dimension_numbers<[1], [0], [0], [1], [0, 0, 1, 1], [], []>} : vector<8x32xf32>, vector<32x128xf32>, vector<8x128xf32> -> vector<8x128xf32>
    %40 = arith.addf %37, %39 : vector<8x128xf32>
    %41 = arith.negf %40 : vector<8x128xf32>
    %42 = math.exp %41 : vector<8x128xf32>
    %cst_21 = arith.constant 1.000000e+00 : f32
    %43 = vector.broadcast %cst_21 : f32 to vector<8x128xf32>
    %44 = arith.addf %43, %42 : vector<8x128xf32>
    %45 = arith.divf %43, %44 : vector<8x128xf32>
    %46 = vector.extract_strided_slice %45 {offsets = [0, 0], sizes = [8, 32], strides = [1, 1]} : vector<8x128xf32> to vector<8x32xf32>
    %47 = vector.extract_strided_slice %45 {offsets = [0, 32], sizes = [8, 32], strides = [1, 1]} : vector<8x128xf32> to vector<8x32xf32>
    %48 = vector.extract_strided_slice %45 {offsets = [0, 64], sizes = [8, 32], strides = [1, 1]} : vector<8x128xf32> to vector<8x32xf32>
    %cst_22 = arith.constant 2.000000e+00 : f32
    %49 = vector.broadcast %cst_22 : f32 to vector<8x32xf32>
    %50 = arith.mulf %49, %48 : vector<8x32xf32>
    %cst_23 = arith.constant 1.000000e+00 : f32
    %51 = vector.broadcast %cst_23 : f32 to vector<8x32xf32>
    %52 = arith.subf %50, %51 : vector<8x32xf32>
    %53 = vector.extract_strided_slice %45 {offsets = [0, 96], sizes = [8, 32], strides = [1, 1]} : vector<8x128xf32> to vector<8x32xf32>
    %54 = arith.mulf %47, %31 : vector<8x32xf32>
    %55 = arith.mulf %46, %52 : vector<8x32xf32>
    %56 = arith.addf %54, %55 : vector<8x32xf32>
    %57 = math.tanh %56 : vector<8x32xf32>
    %58 = arith.mulf %53, %57 : vector<8x32xf32>
    %c2_i32 = arith.constant 2 : i32
    %c8_i32_24 = arith.constant 8 : i32
    %59 = arith.muli %c2_i32, %c8_i32_24 : i32
    %60 = tpu.assume_multiple %59, 8 : i32
    %61 = arith.index_cast %60 : i32 to index
    %c0_25 = arith.constant 0 : index
    %62 = vector.load %arg7[%61, %c0_25] : memref<64x128xf32, #tpu.memory_space<vmem>>, vector<8x128xf32>
    %c0_26 = arith.constant 0 : index
    %c0_27 = arith.constant 0 : index
    %63 = vector.load %arg3[%c0_26, %c0_27] : memref<32x128xf32, #tpu.memory_space<vmem>>, vector<32x128xf32>
    %cst_28 = arith.constant dense<0.000000e+00> : vector<8x128xf32>
    %64 = tpu.matmul %58, %63, %cst_28 {dimension_numbers = #tpu.dot_dimension_numbers<[1], [0], [0], [1], [0, 0, 1, 1], [], []>} : vector<8x32xf32>, vector<32x128xf32>, vector<8x128xf32> -> vector<8x128xf32>
    %65 = arith.addf %62, %64 : vector<8x128xf32>
    %66 = arith.negf %65 : vector<8x128xf32>
    %67 = math.exp %66 : vector<8x128xf32>
    %cst_29 = arith.constant 1.000000e+00 : f32
    %68 = vector.broadcast %cst_29 : f32 to vector<8x128xf32>
    %69 = arith.addf %68, %67 : vector<8x128xf32>
    %70 = arith.divf %68, %69 : vector<8x128xf32>
    %71 = vector.extract_strided_slice %70 {offsets = [0, 0], sizes = [8, 32], strides = [1, 1]} : vector<8x128xf32> to vector<8x32xf32>
    %72 = vector.extract_strided_slice %70 {offsets = [0, 32], sizes = [8, 32], strides = [1, 1]} : vector<8x128xf32> to vector<8x32xf32>
    %73 = vector.extract_strided_slice %70 {offsets = [0, 64], sizes = [8, 32], strides = [1, 1]} : vector<8x128xf32> to vector<8x32xf32>
    %cst_30 = arith.constant 2.000000e+00 : f32
    %74 = vector.broadcast %cst_30 : f32 to vector<8x32xf32>
    %75 = arith.mulf %74, %73 : vector<8x32xf32>
    %cst_31 = arith.constant 1.000000e+00 : f32
    %76 = vector.broadcast %cst_31 : f32 to vector<8x32xf32>
    %77 = arith.subf %75, %76 : vector<8x32xf32>
    %78 = vector.extract_strided_slice %70 {offsets = [0, 96], sizes = [8, 32], strides = [1, 1]} : vector<8x128xf32> to vector<8x32xf32>
    %79 = arith.mulf %72, %56 : vector<8x32xf32>
    %80 = arith.mulf %71, %77 : vector<8x32xf32>
    %81 = arith.addf %79, %80 : vector<8x32xf32>
    %82 = math.tanh %81 : vector<8x32xf32>
    %83 = arith.mulf %78, %82 : vector<8x32xf32>
    %c3_i32 = arith.constant 3 : i32
    %c8_i32_32 = arith.constant 8 : i32
    %84 = arith.muli %c3_i32, %c8_i32_32 : i32
    %85 = tpu.assume_multiple %84, 8 : i32
    %86 = arith.index_cast %85 : i32 to index
    %c0_33 = arith.constant 0 : index
    %87 = vector.load %arg7[%86, %c0_33] : memref<64x128xf32, #tpu.memory_space<vmem>>, vector<8x128xf32>
    %c0_34 = arith.constant 0 : index
    %c0_35 = arith.constant 0 : index
    %88 = vector.load %arg3[%c0_34, %c0_35] : memref<32x128xf32, #tpu.memory_space<vmem>>, vector<32x128xf32>
    %cst_36 = arith.constant dense<0.000000e+00> : vector<8x128xf32>
    %89 = tpu.matmul %83, %88, %cst_36 {dimension_numbers = #tpu.dot_dimension_numbers<[1], [0], [0], [1], [0, 0, 1, 1], [], []>} : vector<8x32xf32>, vector<32x128xf32>, vector<8x128xf32> -> vector<8x128xf32>
    %90 = arith.addf %87, %89 : vector<8x128xf32>
    %91 = arith.negf %90 : vector<8x128xf32>
    %92 = math.exp %91 : vector<8x128xf32>
    %cst_37 = arith.constant 1.000000e+00 : f32
    %93 = vector.broadcast %cst_37 : f32 to vector<8x128xf32>
    %94 = arith.addf %93, %92 : vector<8x128xf32>
    %95 = arith.divf %93, %94 : vector<8x128xf32>
    %96 = vector.extract_strided_slice %95 {offsets = [0, 0], sizes = [8, 32], strides = [1, 1]} : vector<8x128xf32> to vector<8x32xf32>
    %97 = vector.extract_strided_slice %95 {offsets = [0, 32], sizes = [8, 32], strides = [1, 1]} : vector<8x128xf32> to vector<8x32xf32>
    %98 = vector.extract_strided_slice %95 {offsets = [0, 64], sizes = [8, 32], strides = [1, 1]} : vector<8x128xf32> to vector<8x32xf32>
    %cst_38 = arith.constant 2.000000e+00 : f32
    %99 = vector.broadcast %cst_38 : f32 to vector<8x32xf32>
    %100 = arith.mulf %99, %98 : vector<8x32xf32>
    %cst_39 = arith.constant 1.000000e+00 : f32
    %101 = vector.broadcast %cst_39 : f32 to vector<8x32xf32>
    %102 = arith.subf %100, %101 : vector<8x32xf32>
    %103 = vector.extract_strided_slice %95 {offsets = [0, 96], sizes = [8, 32], strides = [1, 1]} : vector<8x128xf32> to vector<8x32xf32>
    %104 = arith.mulf %97, %81 : vector<8x32xf32>
    %105 = arith.mulf %96, %102 : vector<8x32xf32>
    %106 = arith.addf %104, %105 : vector<8x32xf32>
    %107 = math.tanh %106 : vector<8x32xf32>
    %108 = arith.mulf %103, %107 : vector<8x32xf32>
    %c4_i32 = arith.constant 4 : i32
    %c8_i32_40 = arith.constant 8 : i32
    %109 = arith.muli %c4_i32, %c8_i32_40 : i32
    %110 = tpu.assume_multiple %109, 8 : i32
    %111 = arith.index_cast %110 : i32 to index
    %c0_41 = arith.constant 0 : index
    %112 = vector.load %arg7[%111, %c0_41] : memref<64x128xf32, #tpu.memory_space<vmem>>, vector<8x128xf32>
    %c0_42 = arith.constant 0 : index
    %c0_43 = arith.constant 0 : index
    %113 = vector.load %arg3[%c0_42, %c0_43] : memref<32x128xf32, #tpu.memory_space<vmem>>, vector<32x128xf32>
    %cst_44 = arith.constant dense<0.000000e+00> : vector<8x128xf32>
    %114 = tpu.matmul %108, %113, %cst_44 {dimension_numbers = #tpu.dot_dimension_numbers<[1], [0], [0], [1], [0, 0, 1, 1], [], []>} : vector<8x32xf32>, vector<32x128xf32>, vector<8x128xf32> -> vector<8x128xf32>
    %115 = arith.addf %112, %114 : vector<8x128xf32>
    %116 = arith.negf %115 : vector<8x128xf32>
    %117 = math.exp %116 : vector<8x128xf32>
    %cst_45 = arith.constant 1.000000e+00 : f32
    %118 = vector.broadcast %cst_45 : f32 to vector<8x128xf32>
    %119 = arith.addf %118, %117 : vector<8x128xf32>
    %120 = arith.divf %118, %119 : vector<8x128xf32>
    %121 = vector.extract_strided_slice %120 {offsets = [0, 0], sizes = [8, 32], strides = [1, 1]} : vector<8x128xf32> to vector<8x32xf32>
    %122 = vector.extract_strided_slice %120 {offsets = [0, 32], sizes = [8, 32], strides = [1, 1]} : vector<8x128xf32> to vector<8x32xf32>
    %123 = vector.extract_strided_slice %120 {offsets = [0, 64], sizes = [8, 32], strides = [1, 1]} : vector<8x128xf32> to vector<8x32xf32>
    %cst_46 = arith.constant 2.000000e+00 : f32
    %124 = vector.broadcast %cst_46 : f32 to vector<8x32xf32>
    %125 = arith.mulf %124, %123 : vector<8x32xf32>
    %cst_47 = arith.constant 1.000000e+00 : f32
    %126 = vector.broadcast %cst_47 : f32 to vector<8x32xf32>
    %127 = arith.subf %125, %126 : vector<8x32xf32>
    %128 = vector.extract_strided_slice %120 {offsets = [0, 96], sizes = [8, 32], strides = [1, 1]} : vector<8x128xf32> to vector<8x32xf32>
    %129 = arith.mulf %122, %106 : vector<8x32xf32>
    %130 = arith.mulf %121, %127 : vector<8x32xf32>
    %131 = arith.addf %129, %130 : vector<8x32xf32>
    %132 = math.tanh %131 : vector<8x32xf32>
    %133 = arith.mulf %128, %132 : vector<8x32xf32>
    %c5_i32 = arith.constant 5 : i32
    %c8_i32_48 = arith.constant 8 : i32
    %134 = arith.muli %c5_i32, %c8_i32_48 : i32
    %135 = tpu.assume_multiple %134, 8 : i32
    %136 = arith.index_cast %135 : i32 to index
    %c0_49 = arith.constant 0 : index
    %137 = vector.load %arg7[%136, %c0_49] : memref<64x128xf32, #tpu.memory_space<vmem>>, vector<8x128xf32>
    %c0_50 = arith.constant 0 : index
    %c0_51 = arith.constant 0 : index
    %138 = vector.load %arg3[%c0_50, %c0_51] : memref<32x128xf32, #tpu.memory_space<vmem>>, vector<32x128xf32>
    %cst_52 = arith.constant dense<0.000000e+00> : vector<8x128xf32>
    %139 = tpu.matmul %133, %138, %cst_52 {dimension_numbers = #tpu.dot_dimension_numbers<[1], [0], [0], [1], [0, 0, 1, 1], [], []>} : vector<8x32xf32>, vector<32x128xf32>, vector<8x128xf32> -> vector<8x128xf32>
    %140 = arith.addf %137, %139 : vector<8x128xf32>
    %141 = arith.negf %140 : vector<8x128xf32>
    %142 = math.exp %141 : vector<8x128xf32>
    %cst_53 = arith.constant 1.000000e+00 : f32
    %143 = vector.broadcast %cst_53 : f32 to vector<8x128xf32>
    %144 = arith.addf %143, %142 : vector<8x128xf32>
    %145 = arith.divf %143, %144 : vector<8x128xf32>
    %146 = vector.extract_strided_slice %145 {offsets = [0, 0], sizes = [8, 32], strides = [1, 1]} : vector<8x128xf32> to vector<8x32xf32>
    %147 = vector.extract_strided_slice %145 {offsets = [0, 32], sizes = [8, 32], strides = [1, 1]} : vector<8x128xf32> to vector<8x32xf32>
    %148 = vector.extract_strided_slice %145 {offsets = [0, 64], sizes = [8, 32], strides = [1, 1]} : vector<8x128xf32> to vector<8x32xf32>
    %cst_54 = arith.constant 2.000000e+00 : f32
    %149 = vector.broadcast %cst_54 : f32 to vector<8x32xf32>
    %150 = arith.mulf %149, %148 : vector<8x32xf32>
    %cst_55 = arith.constant 1.000000e+00 : f32
    %151 = vector.broadcast %cst_55 : f32 to vector<8x32xf32>
    %152 = arith.subf %150, %151 : vector<8x32xf32>
    %153 = vector.extract_strided_slice %145 {offsets = [0, 96], sizes = [8, 32], strides = [1, 1]} : vector<8x128xf32> to vector<8x32xf32>
    %154 = arith.mulf %147, %131 : vector<8x32xf32>
    %155 = arith.mulf %146, %152 : vector<8x32xf32>
    %156 = arith.addf %154, %155 : vector<8x32xf32>
    %157 = math.tanh %156 : vector<8x32xf32>
    %158 = arith.mulf %153, %157 : vector<8x32xf32>
    %c6_i32 = arith.constant 6 : i32
    %c8_i32_56 = arith.constant 8 : i32
    %159 = arith.muli %c6_i32, %c8_i32_56 : i32
    %160 = tpu.assume_multiple %159, 8 : i32
    %161 = arith.index_cast %160 : i32 to index
    %c0_57 = arith.constant 0 : index
    %162 = vector.load %arg7[%161, %c0_57] : memref<64x128xf32, #tpu.memory_space<vmem>>, vector<8x128xf32>
    %c0_58 = arith.constant 0 : index
    %c0_59 = arith.constant 0 : index
    %163 = vector.load %arg3[%c0_58, %c0_59] : memref<32x128xf32, #tpu.memory_space<vmem>>, vector<32x128xf32>
    %cst_60 = arith.constant dense<0.000000e+00> : vector<8x128xf32>
    %164 = tpu.matmul %158, %163, %cst_60 {dimension_numbers = #tpu.dot_dimension_numbers<[1], [0], [0], [1], [0, 0, 1, 1], [], []>} : vector<8x32xf32>, vector<32x128xf32>, vector<8x128xf32> -> vector<8x128xf32>
    %165 = arith.addf %162, %164 : vector<8x128xf32>
    %166 = arith.negf %165 : vector<8x128xf32>
    %167 = math.exp %166 : vector<8x128xf32>
    %cst_61 = arith.constant 1.000000e+00 : f32
    %168 = vector.broadcast %cst_61 : f32 to vector<8x128xf32>
    %169 = arith.addf %168, %167 : vector<8x128xf32>
    %170 = arith.divf %168, %169 : vector<8x128xf32>
    %171 = vector.extract_strided_slice %170 {offsets = [0, 0], sizes = [8, 32], strides = [1, 1]} : vector<8x128xf32> to vector<8x32xf32>
    %172 = vector.extract_strided_slice %170 {offsets = [0, 32], sizes = [8, 32], strides = [1, 1]} : vector<8x128xf32> to vector<8x32xf32>
    %173 = vector.extract_strided_slice %170 {offsets = [0, 64], sizes = [8, 32], strides = [1, 1]} : vector<8x128xf32> to vector<8x32xf32>
    %cst_62 = arith.constant 2.000000e+00 : f32
    %174 = vector.broadcast %cst_62 : f32 to vector<8x32xf32>
    %175 = arith.mulf %174, %173 : vector<8x32xf32>
    %cst_63 = arith.constant 1.000000e+00 : f32
    %176 = vector.broadcast %cst_63 : f32 to vector<8x32xf32>
    %177 = arith.subf %175, %176 : vector<8x32xf32>
    %178 = vector.extract_strided_slice %170 {offsets = [0, 96], sizes = [8, 32], strides = [1, 1]} : vector<8x128xf32> to vector<8x32xf32>
    %179 = arith.mulf %172, %156 : vector<8x32xf32>
    %180 = arith.mulf %171, %177 : vector<8x32xf32>
    %181 = arith.addf %179, %180 : vector<8x32xf32>
    %182 = math.tanh %181 : vector<8x32xf32>
    %183 = arith.mulf %178, %182 : vector<8x32xf32>
    %c7_i32 = arith.constant 7 : i32
    %c8_i32_64 = arith.constant 8 : i32
    %184 = arith.muli %c7_i32, %c8_i32_64 : i32
    %185 = tpu.assume_multiple %184, 8 : i32
    %186 = arith.index_cast %185 : i32 to index
    %c0_65 = arith.constant 0 : index
    %187 = vector.load %arg7[%186, %c0_65] : memref<64x128xf32, #tpu.memory_space<vmem>>, vector<8x128xf32>
    %c0_66 = arith.constant 0 : index
    %c0_67 = arith.constant 0 : index
    %188 = vector.load %arg3[%c0_66, %c0_67] : memref<32x128xf32, #tpu.memory_space<vmem>>, vector<32x128xf32>
    %cst_68 = arith.constant dense<0.000000e+00> : vector<8x128xf32>
    %189 = tpu.matmul %183, %188, %cst_68 {dimension_numbers = #tpu.dot_dimension_numbers<[1], [0], [0], [1], [0, 0, 1, 1], [], []>} : vector<8x32xf32>, vector<32x128xf32>, vector<8x128xf32> -> vector<8x128xf32>
    %190 = arith.addf %187, %189 : vector<8x128xf32>
    %191 = arith.negf %190 : vector<8x128xf32>
    %192 = math.exp %191 : vector<8x128xf32>
    %cst_69 = arith.constant 1.000000e+00 : f32
    %193 = vector.broadcast %cst_69 : f32 to vector<8x128xf32>
    %194 = arith.addf %193, %192 : vector<8x128xf32>
    %195 = arith.divf %193, %194 : vector<8x128xf32>
    %196 = vector.extract_strided_slice %195 {offsets = [0, 0], sizes = [8, 32], strides = [1, 1]} : vector<8x128xf32> to vector<8x32xf32>
    %197 = vector.extract_strided_slice %195 {offsets = [0, 32], sizes = [8, 32], strides = [1, 1]} : vector<8x128xf32> to vector<8x32xf32>
    %198 = vector.extract_strided_slice %195 {offsets = [0, 64], sizes = [8, 32], strides = [1, 1]} : vector<8x128xf32> to vector<8x32xf32>
    %cst_70 = arith.constant 2.000000e+00 : f32
    %199 = vector.broadcast %cst_70 : f32 to vector<8x32xf32>
    %200 = arith.mulf %199, %198 : vector<8x32xf32>
    %cst_71 = arith.constant 1.000000e+00 : f32
    %201 = vector.broadcast %cst_71 : f32 to vector<8x32xf32>
    %202 = arith.subf %200, %201 : vector<8x32xf32>
    %203 = vector.extract_strided_slice %195 {offsets = [0, 96], sizes = [8, 32], strides = [1, 1]} : vector<8x128xf32> to vector<8x32xf32>
    %204 = arith.mulf %197, %181 : vector<8x32xf32>
    %205 = arith.mulf %196, %202 : vector<8x32xf32>
    %206 = arith.addf %204, %205 : vector<8x32xf32>
    %207 = math.tanh %206 : vector<8x32xf32>
    %208 = arith.mulf %203, %207 : vector<8x32xf32>
    %c8_i32_72 = arith.constant 8 : i32
    %c0_73 = arith.constant 0 : index
    %c0_74 = arith.constant 0 : index
    %209 = vector.load %arg4[%c0_73, %c0_74] : memref<32x8xf32, #tpu.memory_space<vmem>>, vector<32x8xf32>
    %cst_75 = arith.constant dense<0.000000e+00> : vector<8x8xf32>
    %210 = tpu.matmul %208, %209, %cst_75 {dimension_numbers = #tpu.dot_dimension_numbers<[1], [0], [0], [1], [0, 0, 1, 1], [], []>} : vector<8x32xf32>, vector<32x8xf32>, vector<8x8xf32> -> vector<8x8xf32>
    %c0_76 = arith.constant 0 : index
    %c0_77 = arith.constant 0 : index
    %211 = vector.load %arg5[%c0_76, %c0_77] : memref<1x8xf32, #tpu.memory_space<vmem>>, vector<1x8xf32>
    %212 = vector.broadcast %211 : vector<1x8xf32> to vector<8x8xf32>
    %213 = arith.addf %210, %212 : vector<8x8xf32>
    %c0_78 = arith.constant 0 : index
    %c0_79 = arith.constant 0 : index
    %214 = vector.load %arg6[%c0_78, %c0_79] : memref<8x8xf32, #tpu.memory_space<vmem>>, vector<8x8xf32>
    tpu.vector_store %arg6[%c0_78, %c0_79], %213 {strides = array<i32>} : memref<8x8xf32, #tpu.memory_space<vmem>>, vector<8x8xf32>,
    return
  }
}

</mosaic_0001>

<llo_original>
// kernel: tpu_custom_call.1
$region0: #{tpu_custom_call.1}
  #allocation0 [shape = 'u32[]', space=smem, size = 0x4, offset = 0x4, fixed_abs, tag = 'smem constant byte address 0x4 - core index']
  #allocation1 [shape = 'u32[144,128]{1,0:T(1,128)}', space=vmem, size = 0x12000, scoped, tag = 'internal scratch']
  #allocation2 [shape = 'f32[64,128]{1,0:T(8,128)}', space=vmem, size = 0x8000, scoped, tag = 'scratch operand']
  %s0 = inlined_call_operand.vmem [shape: f32[64,32], index: 0, kind: input, shape index: {}]
  %s1 = inlined_call_operand.vmem [shape: f32[32,128], index: 1, kind: input, shape index: {}]
  %s2 = inlined_call_operand.vmem [shape: f32[1,128], index: 2, kind: input, shape index: {}]
  %s3 = inlined_call_operand.vmem [shape: f32[32,128], index: 3, kind: input, shape index: {}]
  %s4 = inlined_call_operand.vmem [shape: f32[32,8], index: 4, kind: input, shape index: {}]
  %s5 = inlined_call_operand.vmem [shape: f32[1,8], index: 5, kind: input, shape index: {}]
  %s6 = inlined_call_operand.hbm [shape: f32[8,8], index: 6, kind: output, shape index: {}]
  %s7 = sld [smem:[#allocation0]]
  $region34: #{tpu_custom_call.1} parent=0
    _
  %s9 = ssub.s32 1, %s7
  %s10 = scalar_select 0, %s9, %s7
  $region1: #{tpu_custom_call.1} parent=0
    #allocation3 [shape = 'u8[4096]{0}', space=vmem, size = 0x1000, scoped, tag = 'output window, operand 0, single buffered']
    #allocation4 [shape = 's32[1]{0}', space=sflag, size = 0x4, scoped, tag = 'scoped memory for tpu_custom_call.1']
    %11 = vsyncpa [#allocation4], 0
    // Predicated region
    $region2: #{tpu_custom_call.1} parent=1 // pred_check
      _
    $region3: #{tpu_custom_call.1} parent=1 // pred_check_branch
      %13 = sbr.rel (0) target = $region5
    $region4: #{tpu_custom_call.1} parent=1 // pred_region
      _
    $region5: #{tpu_custom_call.1} parent=1 // pred_fallthru
      _
    // Predicated region
    $region6: #{tpu_custom_call.1} parent=1 // pred_check
      _
    $region7: #{tpu_custom_call.1} parent=1 // pred_check_branch
      %15 = sbr.rel (0) target = $region9
    $region8: #{tpu_custom_call.1} parent=1 // pred_region
      _
    $region9: #{tpu_custom_call.1} parent=1 // pred_fallthru
      _
    // Predicated region
    $region10: #{tpu_custom_call.1} parent=1 // pred_check
      _
    $region11: #{tpu_custom_call.1} parent=1 // pred_check_branch
      %17 = sbr.rel (0) target = $region13
    $region12: #{tpu_custom_call.1} parent=1 // pred_region
      _
    $region13: #{tpu_custom_call.1} parent=1 // pred_fallthru
      _
    // Predicated region
    $region14: #{tpu_custom_call.1} parent=1 // pred_check
      _
    $region15: #{tpu_custom_call.1} parent=1 // pred_check_branch
      %19 = sbr.rel (0) target = $region17
    $region16: #{tpu_custom_call.1} parent=1 // pred_region
      _
    $region17: #{tpu_custom_call.1} parent=1 // pred_fallthru
      _
    // Predicated region
    $region18: #{tpu_custom_call.1} parent=1 // pred_check
      _
    $region19: #{tpu_custom_call.1} parent=1 // pred_check_branch
      %21 = sbr.rel (0) target = $region21
    $region20: #{tpu_custom_call.1} parent=1 // pred_region
      _
    $region21: #{tpu_custom_call.1} parent=1 // pred_fallthru
      _
    // Predicated region
    $region22: #{tpu_custom_call.1} parent=1 // pred_check
      _
    $region23: #{tpu_custom_call.1} parent=1 // pred_check_branch
      %23 = sbr.rel (0) target = $region25
    $region24: #{tpu_custom_call.1} parent=1 // pred_region
      _
    $region25: #{tpu_custom_call.1} parent=1 // pred_fallthru
      _
    %v24 = vld [vmem:[%s0] sm:$0xff]
    %v25 = vld [vmem:[%s0 + $0x8] sm:$0xff]
    %v26 = vld [vmem:[%s0 + $0x10] sm:$0xff]
    %v27 = vld [vmem:[%s0 + $0x18] sm:$0xff]
    %v28 = vld [vmem:[%s0 + $0x20] sm:$0xff]
    %v29 = vld [vmem:[%s0 + $0x28] sm:$0xff]
    %v30 = vld [vmem:[%s0 + $0x30] sm:$0xff]
    %v31 = vld [vmem:[%s0 + $0x38] sm:$0xff]
    %v32 = vld [vmem:[%s1] sm:$0xff]
    %v33 = vld [vmem:[%s1 + $0x8] sm:$0xff]
    %v34 = vld [vmem:[%s1 + $0x10] sm:$0xff]
    %v35 = vld [vmem:[%s1 + $0x18] sm:$0xff]
    %v36 = vld [vmem:[%s2] sm:$0x1]
    %v38 = vlaneseq
    %v39 = vshrl.u32 %v38, 7
    %v40 = vsub.s32 0, %v39
    %v41 = vrot.slane %v36, %v40
    %vm43 = vcmask 261120
    %v45 = vsel %vm43, %v24, 0
    %v48 = vsel %vm43, %v25, 0
    %v51 = vsel %vm43, %v26, 0
    %v54 = vsel %vm43, %v27, 0
    %v57 = vsel %vm43, %v28, 0
    %v60 = vsel %vm43, %v29, 0
    %v63 = vsel %vm43, %v30, 0
    %v66 = vsel %vm43, %v31, 0
    %68 = vmatprep.subr.mxu0 0.0
    %69 = vmatpush1.msra.mxu0 0.0
    %70 = vmatprep.subr.mxu0 0.0
    %71 = vmatpush1.msra.mxu0 0.0
    %72 = vmatprep.subr.mxu0 0.0
    %73 = vmatpush1.msra.mxu0 0.0
    %74 = vmatprep.subr.mxu0 0.0
    %75 = vmatpush1.msra.mxu0 0.0
    %76 = vmatprep.subr.mxu0 0.0
    %77 = vmatpush1.msra.mxu0 0.0
    %78 = vmatprep.subr.mxu0 0.0
    %79 = vmatpush1.msra.mxu0 0.0
    %80 = vmatprep.subr.mxu0 0.0
    %81 = vmatpush1.msra.mxu0 0.0
    %82 = vmatprep.subr.mxu0 0.0
    %83 = vmatpush1.msra.mxu0 0.0
    %84 = vmatprep.subr.mxu0 0.0
    %85 = vmatpush1.msra.mxu0 0.0
    %86 = vmatprep.subr.mxu0 0.0
    %87 = vmatpush1.msra.mxu0 0.0
    %88 = vmatprep.subr.mxu0 0.0
    %89 = vmatpush1.msra.mxu0 0.0
    %90 = vmatprep.subr.mxu0 0.0
    %91 = vmatpush1.msra.mxu0 0.0
    %92 = vmatprep.subr.mxu0 0.0
    %93 = vmatpush1.msra.mxu0 %v35
    %94 = vmatprep.subr.mxu0 0.0
    %95 = vmatpush1.msra.mxu0 %v34
    %96 = vmatprep.subr.mxu0 0.0
    %97 = vmatpush1.msra.mxu0 %v33
    %98 = vmatprep.subr.mxu0 0.0
    %99 = vmatpush1.msra.mxu0 %v32
    %100 = vmatprep.subr.mxu0 0.0
    %101 = vmatpush2.msra.mxu0 0.0
    %102 = vmatprep.subr.mxu0 0.0
    %103 = vmatpush2.msra.mxu0 0.0
    %104 = vmatprep.subr.mxu0 0.0
    %105 = vmatpush2.msra.mxu0 0.0
    %106 = vmatprep.subr.mxu0 0.0
    %107 = vmatpush2.msra.mxu0 0.0
    %108 = vmatprep.subr.mxu0 0.0
    %109 = vmatpush2.msra.mxu0 0.0
    %110 = vmatprep.subr.mxu0 0.0
    %111 = vmatpush2.msra.mxu0 0.0
    %112 = vmatprep.subr.mxu0 0.0
    %113 = vmatpush2.msra.mxu0 0.0
    %114 = vmatprep.subr.mxu0 0.0
    %115 = vmatpush2.msra.mxu0 0.0
    %116 = vmatprep.subr.mxu0 0.0
    %117 = vmatpush2.msra.mxu0 0.0
    %118 = vmatprep.subr.mxu0 0.0
    %119 = vmatpush2.msra.mxu0 0.0
    %120 = vmatprep.subr.mxu0 0.0
    %121 = vmatpush2.msra.mxu0 0.0
    %122 = vmatprep.subr.mxu0 0.0
    %123 = vmatpush2.msra.mxu0 0.0
    %124 = vmatprep.subr.mxu0 0.0
    %125 = vmatpush2.msra.mxu0 0.0
    %126 = vmatprep.subr.mxu0 0.0
    %127 = vmatpush2.msra.mxu0 0.0
    %128 = vmatprep.subr.mxu0 0.0
    %129 = vmatpush2.msra.mxu0 0.0
    %130 = vmatprep.subr.mxu0 0.0
    %131 = vmatpush2.msra.mxu0 0.0
    %132 = vmatprep.mubr.f32.mxu0 0.0
    %133 = vmatmul.mubr.f32.gmra.mxu0 %v45
    %v134 = vpop.f32.mrf.mxu0
    %v135 = vadd.f32 %v41, %v134
    %v136 = vpop.f32.mrf.mxu0
    %137 = vmatprep.mubr.f32.mxu0 0.0
    %138 = vmatmul.mubr.f32.gmra.mxu0 %v48
    %v139 = vpop.f32.mrf.mxu0
    %v140 = vadd.f32 %v41, %v139
    %v141 = vpop.f32.mrf.mxu0
    %142 = vmatprep.mubr.f32.mxu0 0.0
    %143 = vmatmul.mubr.f32.gmra.mxu0 %v51
    %v144 = vpop.f32.mrf.mxu0
    %v145 = vadd.f32 %v41, %v144
    %v146 = vpop.f32.mrf.mxu0
    %147 = vmatprep.mubr.f32.mxu0 0.0
    %148 = vmatmul.mubr.f32.gmra.mxu0 %v54
    %v149 = vpop.f32.mrf.mxu0
    %v150 = vadd.f32 %v41, %v149
    %v151 = vpop.f32.mrf.mxu0
    %152 = vmatprep.mubr.f32.mxu0 0.0
    %153 = vmatmul.mubr.f32.gmra.mxu0 %v57
    %v154 = vpop.f32.mrf.mxu0
    %v155 = vadd.f32 %v41, %v154
    %v156 = vpop.f32.mrf.mxu0
    %157 = vmatprep.mubr.f32.mxu0 0.0
    %158 = vmatmul.mubr.f32.gmra.mxu0 %v60
    %v159 = vpop.f32.mrf.mxu0
    %v160 = vadd.f32 %v41, %v159
    %v161 = vpop.f32.mrf.mxu0
    %162 = vmatprep.mubr.f32.mxu0 0.0
    %163 = vmatmul.mubr.f32.gmra.mxu0 %v63
    %v164 = vpop.f32.mrf.mxu0
    %v165 = vadd.f32 %v41, %v164
    %v166 = vpop.f32.mrf.mxu0
    %167 = vmatprep.mubr.f32.mxu0 0.0
    %168 = vmatmul.mubr.f32.gmra.mxu0 %v66
    %v169 = vpop.f32.mrf.mxu0
    %v170 = vadd.f32 %v41, %v169
    %v171 = vpop.f32.mrf.mxu0
    %172 = vdwg.mxu0
    %173 = vst [vmem:[#allocation2] sm:$0xff] %v135
    %174 = vst [vmem:[#allocation2 + $0x8] sm:$0xff] %v140
    %175 = vst [vmem:[#allocation2 + $0x10] sm:$0xff] %v145
    %176 = vst [vmem:[#allocation2 + $0x18] sm:$0xff] %v150
    %177 = vst [vmem:[#allocation2 + $0x20] sm:$0xff] %v155
    %178 = vst [vmem:[#allocation2 + $0x28] sm:$0xff] %v160
    %179 = vst [vmem:[#allocation2 + $0x30] sm:$0xff] %v165
    %180 = vst [vmem:[#allocation2 + $0x38] sm:$0xff] %v170
    %v181 = vld [vmem:[#allocation2] sm:$0xff]
    %v182 = vld [vmem:[%s3] sm:$0xff]
    %v183 = vld [vmem:[%s3 + $0x8] sm:$0xff]
    %v184 = vld [vmem:[%s3 + $0x10] sm:$0xff]
    %v185 = vld [vmem:[%s3 + $0x18] sm:$0xff]
    %v187 = vsel %vm43, 0.0, 0
    %189 = vmatprep.subr.mxu0 0.0
    %190 = vmatpush1.msra.mxu0 0.0
    %191 = vmatprep.subr.mxu0 0.0
    %192 = vmatpush1.msra.mxu0 0.0
    %193 = vmatprep.subr.mxu0 0.0
    %194 = vmatpush1.msra.mxu0 0.0
    %195 = vmatprep.subr.mxu0 0.0
    %196 = vmatpush1.msra.mxu0 0.0
    %197 = vmatprep.subr.mxu0 0.0
    %198 = vmatpush1.msra.mxu0 0.0
    %199 = vmatprep.subr.mxu0 0.0
    %200 = vmatpush1.msra.mxu0 0.0
    %201 = vmatprep.subr.mxu0 0.0
    %202 = vmatpush1.msra.mxu0 0.0
    %203 = vmatprep.subr.mxu0 0.0
    %204 = vmatpush1.msra.mxu0 0.0
    %205 = vmatprep.subr.mxu0 0.0
    %206 = vmatpush1.msra.mxu0 0.0
    %207 = vmatprep.subr.mxu0 0.0
    %208 = vmatpush1.msra.mxu0 0.0
    %209 = vmatprep.subr.mxu0 0.0
    %210 = vmatpush1.msra.mxu0 0.0
    %211 = vmatprep.subr.mxu0 0.0
    %212 = vmatpush1.msra.mxu0 0.0
    %213 = vmatprep.subr.mxu0 0.0
    %214 = vmatpush1.msra.mxu0 %v185
    %215 = vmatprep.subr.mxu0 0.0
    %216 = vmatpush1.msra.mxu0 %v184
    %217 = vmatprep.subr.mxu0 0.0
    %218 = vmatpush1.msra.mxu0 %v183
    %219 = vmatprep.subr.mxu0 0.0
    %220 = vmatpush1.msra.mxu0 %v182
    %221 = vmatprep.subr.mxu0 0.0
    %222 = vmatpush2.msra.mxu0 0.0
    %223 = vmatprep.subr.mxu0 0.0
    %224 = vmatpush2.msra.mxu0 0.0
    %225 = vmatprep.subr.mxu0 0.0
    %226 = vmatpush2.msra.mxu0 0.0
    %227 = vmatprep.subr.mxu0 0.0
    %228 = vmatpush2.msra.mxu0 0.0
    %229 = vmatprep.subr.mxu0 0.0
    %230 = vmatpush2.msra.mxu0 0.0
    %231 = vmatprep.subr.mxu0 0.0
    %232 = vmatpush2.msra.mxu0 0.0
    %233 = vmatprep.subr.mxu0 0.0
    %234 = vmatpush2.msra.mxu0 0.0
    %235 = vmatprep.subr.mxu0 0.0
    %236 = vmatpush2.msra.mxu0 0.0
    %237 = vmatprep.subr.mxu0 0.0
    %238 = vmatpush2.msra.mxu0 0.0
    %239 = vmatprep.subr.mxu0 0.0
    %240 = vmatpush2.msra.mxu0 0.0
    %241 = vmatprep.subr.mxu0 0.0
    %242 = vmatpush2.msra.mxu0 0.0
    %243 = vmatprep.subr.mxu0 0.0
    %244 = vmatpush2.msra.mxu0 0.0
    %245 = vmatprep.subr.mxu0 0.0
    %246 = vmatpush2.msra.mxu0 0.0
    %247 = vmatprep.subr.mxu0 0.0
    %248 = vmatpush2.msra.mxu0 0.0
    %249 = vmatprep.subr.mxu0 0.0
    %250 = vmatpush2.msra.mxu0 0.0
    %251 = vmatprep.subr.mxu0 0.0
    %252 = vmatpush2.msra.mxu0 0.0
    %253 = vmatprep.mubr.f32.mxu0 0.0
    %254 = vmatmul.mubr.f32.gmra.mxu0 %v187
    %v255 = vpop.f32.mrf.mxu0
    %v256 = vadd.f32 0.0, %v255
    %v257 = vpop.f32.mrf.mxu0
    %258 = vdwg.mxu0
    %v259 = vadd.f32 %v181, %v256
    %v260 = vxor.u32 %v259, 2147483648
    %v261 = vmul.f32 %v260, 1.442695
    %v262 = vpow.pop %v261
    %v263 = vadd.f32 %v262, 1.0
    %v264 = vrcp.pop %v263
    %v265 = vmul.f32 1.0, %v264
    %v266 = vmul.f32 %v265, 2.0
    %v267 = vsub.f32 %v266, 1.0
    %v268 = vmul.f32 %v265, 0.0
    %270 = vrot.lane.b32.xlu0 %v267, 64
    %v271 = vpop.permute.xlu0 %270
    %v273 = vmul.f32 %v265, %v271
    %275 = vrot.lane.b32.xlu0 %v273, 32
    %v276 = vpop.permute.xlu0 %275
    %v278 = vadd.f32 %v268, %v276
    %v279 = vtanh.pop %v278
    %281 = vrot.lane.b32.xlu0 %v279, 64
    %v282 = vpop.permute.xlu0 %281
    %v284 = vmul.f32 %v265, %v282
    %s285 = scalar_lea.vmem [#allocation2], 8
    %v286 = vld [vmem:[%s285] sm:$0xff]
    %288 = vrot.lane.b32.xlu0 %v284, 32
    %v289 = vpop.permute.xlu0 %288
    %v290 = vsel %vm43, %v289, 0
    %292 = vmatprep.subr.mxu0 0.0
    %293 = vmatpush1.msra.mxu0 0.0
    %294 = vmatprep.subr.mxu0 0.0
    %295 = vmatpush1.msra.mxu0 0.0
    %296 = vmatprep.subr.mxu0 0.0
    %297 = vmatpush1.msra.mxu0 0.0
    %298 = vmatprep.subr.mxu0 0.0
    %299 = vmatpush1.msra.mxu0 0.0
    %300 = vmatprep.subr.mxu0 0.0
    %301 = vmatpush1.msra.mxu0 0.0
    %302 = vmatprep.subr.mxu0 0.0
    %303 = vmatpush1.msra.mxu0 0.0
    %304 = vmatprep.subr.mxu0 0.0
    %305 = vmatpush1.msra.mxu0 0.0
    %306 = vmatprep.subr.mxu0 0.0
    %307 = vmatpush1.msra.mxu0 0.0
    %308 = vmatprep.subr.mxu0 0.0
    %309 = vmatpush1.msra.mxu0 0.0
    %310 = vmatprep.subr.mxu0 0.0
    %311 = vmatpush1.msra.mxu0 0.0
    %312 = vmatprep.subr.mxu0 0.0
    %313 = vmatpush1.msra.mxu0 0.0
    %314 = vmatprep.subr.mxu0 0.0
    %315 = vmatpush1.msra.mxu0 0.0
    %316 = vmatprep.subr.mxu0 0.0
    %317 = vmatpush1.msra.mxu0 %v185
    %318 = vmatprep.subr.mxu0 0.0
    %319 = vmatpush1.msra.mxu0 %v184
    %320 = vmatprep.subr.mxu0 0.0
    %321 = vmatpush1.msra.mxu0 %v183
    %322 = vmatprep.subr.mxu0 0.0
    %323 = vmatpush1.msra.mxu0 %v182
    %324 = vmatprep.subr.mxu0 0.0
    %325 = vmatpush2.msra.mxu0 0.0
    %326 = vmatprep.subr.mxu0 0.0
    %327 = vmatpush2.msra.mxu0 0.0
    %328 = vmatprep.subr.mxu0 0.0
    %329 = vmatpush2.msra.mxu0 0.0
    %330 = vmatprep.subr.mxu0 0.0
    %331 = vmatpush2.msra.mxu0 0.0
    %332 = vmatprep.subr.mxu0 0.0
    %333 = vmatpush2.msra.mxu0 0.0
    %334 = vmatprep.subr.mxu0 0.0
    %335 = vmatpush2.msra.mxu0 0.0
    %336 = vmatprep.subr.mxu0 0.0
    %337 = vmatpush2.msra.mxu0 0.0
    %338 = vmatprep.subr.mxu0 0.0
    %339 = vmatpush2.msra.mxu0 0.0
    %340 = vmatprep.subr.mxu0 0.0
    %341 = vmatpush2.msra.mxu0 0.0
    %342 = vmatprep.subr.mxu0 0.0
    %343 = vmatpush2.msra.mxu0 0.0
    %344 = vmatprep.subr.mxu0 0.0
    %345 = vmatpush2.msra.mxu0 0.0
    %346 = vmatprep.subr.mxu0 0.0
    %347 = vmatpush2.msra.mxu0 0.0
    %348 = vmatprep.subr.mxu0 0.0
    %349 = vmatpush2.msra.mxu0 0.0
    %350 = vmatprep.subr.mxu0 0.0
    %351 = vmatpush2.msra.mxu0 0.0
    %352 = vmatprep.subr.mxu0 0.0
    %353 = vmatpush2.msra.mxu0 0.0
    %354 = vmatprep.subr.mxu0 0.0
    %355 = vmatpush2.msra.mxu0 0.0
    %356 = vmatprep.mubr.f32.mxu0 0.0
    %357 = vmatmul.mubr.f32.gmra.mxu0 %v290
    %v358 = vpop.f32.mrf.mxu0
    %v359 = vadd.f32 0.0, %v358
    %v360 = vpop.f32.mrf.mxu0
    %361 = vdwg.mxu0
    %v362 = vadd.f32 %v286, %v359
    %v363 = vxor.u32 %v362, 2147483648
    %v364 = vmul.f32 %v363, 1.442695
    %v365 = vpow.pop %v364
    %v366 = vadd.f32 %v365, 1.0
    %v367 = vrcp.pop %v366
    %v368 = vmul.f32 1.0, %v367
    %v369 = vmul.f32 %v368, 2.0
    %v370 = vsub.f32 %v369, 1.0
    %v371 = vmul.f32 %v368, %v278
    %373 = vrot.lane.b32.xlu0 %v370, 64
    %v374 = vpop.permute.xlu0 %373
    %v376 = vmul.f32 %v368, %v374
    %378 = vrot.lane.b32.xlu0 %v376, 32
    %v379 = vpop.permute.xlu0 %378
    %v381 = vadd.f32 %v371, %v379
    %v382 = vtanh.pop %v381
    %384 = vrot.lane.b32.xlu0 %v382, 64
    %v385 = vpop.permute.xlu0 %384
    %v387 = vmul.f32 %v368, %v385
    %s388 = scalar_lea.vmem [#allocation2], 16
    %v389 = vld [vmem:[%s388] sm:$0xff]
    %391 = vrot.lane.b32.xlu0 %v387, 32
    %v392 = vpop.permute.xlu0 %391
    %v393 = vsel %vm43, %v392, 0
    %395 = vmatprep.subr.mxu0 0.0
    %396 = vmatpush1.msra.mxu0 0.0
    %397 = vmatprep.subr.mxu0 0.0
    %398 = vmatpush1.msra.mxu0 0.0
    %399 = vmatprep.subr.mxu0 0.0
    %400 = vmatpush1.msra.mxu0 0.0
    %401 = vmatprep.subr.mxu0 0.0
    %402 = vmatpush1.msra.mxu0 0.0
    %403 = vmatprep.subr.mxu0 0.0
    %404 = vmatpush1.msra.mxu0 0.0
    %405 = vmatprep.subr.mxu0 0.0
    %406 = vmatpush1.msra.mxu0 0.0
    %407 = vmatprep.subr.mxu0 0.0
    %408 = vmatpush1.msra.mxu0 0.0
    %409 = vmatprep.subr.mxu0 0.0
    %410 = vmatpush1.msra.mxu0 0.0
    %411 = vmatprep.subr.mxu0 0.0
    %412 = vmatpush1.msra.mxu0 0.0
    %413 = vmatprep.subr.mxu0 0.0
    %414 = vmatpush1.msra.mxu0 0.0
    %415 = vmatprep.subr.mxu0 0.0
    %416 = vmatpush1.msra.mxu0 0.0
    %417 = vmatprep.subr.mxu0 0.0
    %418 = vmatpush1.msra.mxu0 0.0
    %419 = vmatprep.subr.mxu0 0.0
    %420 = vmatpush1.msra.mxu0 %v185
    %421 = vmatprep.subr.mxu0 0.0
    %422 = vmatpush1.msra.mxu0 %v184
    %423 = vmatprep.subr.mxu0 0.0
    %424 = vmatpush1.msra.mxu0 %v183
    %425 = vmatprep.subr.mxu0 0.0
    %426 = vmatpush1.msra.mxu0 %v182
    %427 = vmatprep.subr.mxu0 0.0
    %428 = vmatpush2.msra.mxu0 0.0
    %429 = vmatprep.subr.mxu0 0.0
    %430 = vmatpush2.msra.mxu0 0.0
    %431 = vmatprep.subr.mxu0 0.0
    %432 = vmatpush2.msra.mxu0 0.0
    %433 = vmatprep.subr.mxu0 0.0
    %434 = vmatpush2.msra.mxu0 0.0
    %435 = vmatprep.subr.mxu0 0.0
    %436 = vmatpush2.msra.mxu0 0.0
    %437 = vmatprep.subr.mxu0 0.0
    %438 = vmatpush2.msra.mxu0 0.0
    %439 = vmatprep.subr.mxu0 0.0
    %440 = vmatpush2.msra.mxu0 0.0
    %441 = vmatprep.subr.mxu0 0.0
    %442 = vmatpush2.msra.mxu0 0.0
    %443 = vmatprep.subr.mxu0 0.0
    %444 = vmatpush2.msra.mxu0 0.0
    %445 = vmatprep.subr.mxu0 0.0
    %446 = vmatpush2.msra.mxu0 0.0
    %447 = vmatprep.subr.mxu0 0.0
    %448 = vmatpush2.msra.mxu0 0.0
    %449 = vmatprep.subr.mxu0 0.0
    %450 = vmatpush2.msra.mxu0 0.0
    %451 = vmatprep.subr.mxu0 0.0
    %452 = vmatpush2.msra.mxu0 0.0
    %453 = vmatprep.subr.mxu0 0.0
    %454 = vmatpush2.msra.mxu0 0.0
    %455 = vmatprep.subr.mxu0 0.0
    %456 = vmatpush2.msra.mxu0 0.0
    %457 = vmatprep.subr.mxu0 0.0
    %458 = vmatpush2.msra.mxu0 0.0
    %459 = vmatprep.mubr.f32.mxu0 0.0
    %460 = vmatmul.mubr.f32.gmra.mxu0 %v393
    %v461 = vpop.f32.mrf.mxu0
    %v462 = vadd.f32 0.0, %v461
    %v463 = vpop.f32.mrf.mxu0
    %464 = vdwg.mxu0
    %v465 = vadd.f32 %v389, %v462
    %v466 = vxor.u32 %v465, 2147483648
    %v467 = vmul.f32 %v466, 1.442695
    %v468 = vpow.pop %v467
    %v469 = vadd.f32 %v468, 1.0
    %v470 = vrcp.pop %v469
    %v471 = vmul.f32 1.0, %v470
    %v472 = vmul.f32 %v471, 2.0
    %v473 = vsub.f32 %v472, 1.0
    %v474 = vmul.f32 %v471, %v381
    %476 = vrot.lane.b32.xlu0 %v473, 64
    %v477 = vpop.permute.xlu0 %476
    %v479 = vmul.f32 %v471, %v477
    %481 = vrot.lane.b32.xlu0 %v479, 32
    %v482 = vpop.permute.xlu0 %481
    %v484 = vadd.f32 %v474, %v482
    %v485 = vtanh.pop %v484
    %487 = vrot.lane.b32.xlu0 %v485, 64
    %v488 = vpop.permute.xlu0 %487
    %v490 = vmul.f32 %v471, %v488
    %s491 = scalar_lea.vmem [#allocation2], 24
    %v492 = vld [vmem:[%s491] sm:$0xff]
    %494 = vrot.lane.b32.xlu0 %v490, 32
    %v495 = vpop.permute.xlu0 %494
    %v496 = vsel %vm43, %v495, 0
    %498 = vmatprep.subr.mxu0 0.0
    %499 = vmatpush1.msra.mxu0 0.0
    %500 = vmatprep.subr.mxu0 0.0
    %501 = vmatpush1.msra.mxu0 0.0
    %502 = vmatprep.subr.mxu0 0.0
    %503 = vmatpush1.msra.mxu0 0.0
    %504 = vmatprep.subr.mxu0 0.0
    %505 = vmatpush1.msra.mxu0 0.0
    %506 = vmatprep.subr.mxu0 0.0
    %507 = vmatpush1.msra.mxu0 0.0
    %508 = vmatprep.subr.mxu0 0.0
    %509 = vmatpush1.msra.mxu0 0.0
    %510 = vmatprep.subr.mxu0 0.0
    %511 = vmatpush1.msra.mxu0 0.0
    %512 = vmatprep.subr.mxu0 0.0
    %513 = vmatpush1.msra.mxu0 0.0
    %514 = vmatprep.subr.mxu0 0.0
    %515 = vmatpush1.msra.mxu0 0.0
    %516 = vmatprep.subr.mxu0 0.0
    %517 = vmatpush1.msra.mxu0 0.0
    %518 = vmatprep.subr.mxu0 0.0
    %519 = vmatpush1.msra.mxu0 0.0
    %520 = vmatprep.subr.mxu0 0.0
    %521 = vmatpush1.msra.mxu0 0.0
    %522 = vmatprep.subr.mxu0 0.0
    %523 = vmatpush1.msra.mxu0 %v185
    %524 = vmatprep.subr.mxu0 0.0
    %525 = vmatpush1.msra.mxu0 %v184
    %526 = vmatprep.subr.mxu0 0.0
    %527 = vmatpush1.msra.mxu0 %v183
    %528 = vmatprep.subr.mxu0 0.0
    %529 = vmatpush1.msra.mxu0 %v182
    %530 = vmatprep.subr.mxu0 0.0
    %531 = vmatpush2.msra.mxu0 0.0
    %532 = vmatprep.subr.mxu0 0.0
    %533 = vmatpush2.msra.mxu0 0.0
    %534 = vmatprep.subr.mxu0 0.0
    %535 = vmatpush2.msra.mxu0 0.0
    %536 = vmatprep.subr.mxu0 0.0
    %537 = vmatpush2.msra.mxu0 0.0
    %538 = vmatprep.subr.mxu0 0.0
    %539 = vmatpush2.msra.mxu0 0.0
    %540 = vmatprep.subr.mxu0 0.0
    %541 = vmatpush2.msra.mxu0 0.0
    %542 = vmatprep.subr.mxu0 0.0
    %543 = vmatpush2.msra.mxu0 0.0
    %544 = vmatprep.subr.mxu0 0.0
    %545 = vmatpush2.msra.mxu0 0.0
    %546 = vmatprep.subr.mxu0 0.0
    %547 = vmatpush2.msra.mxu0 0.0
    %548 = vmatprep.subr.mxu0 0.0
    %549 = vmatpush2.msra.mxu0 0.0
    %550 = vmatprep.subr.mxu0 0.0
    %551 = vmatpush2.msra.mxu0 0.0
    %552 = vmatprep.subr.mxu0 0.0
    %553 = vmatpush2.msra.mxu0 0.0
    %554 = vmatprep.subr.mxu0 0.0
    %555 = vmatpush2.msra.mxu0 0.0
    %556 = vmatprep.subr.mxu0 0.0
    %557 = vmatpush2.msra.mxu0 0.0
    %558 = vmatprep.subr.mxu0 0.0
    %559 = vmatpush2.msra.mxu0 0.0
    %560 = vmatprep.subr.mxu0 0.0
    %561 = vmatpush2.msra.mxu0 0.0
    %562 = vmatprep.mubr.f32.mxu0 0.0
    %563 = vmatmul.mubr.f32.gmra.mxu0 %v496
    %v564 = vpop.f32.mrf.mxu0
    %v565 = vadd.f32 0.0, %v564
    %v566 = vpop.f32.mrf.mxu0
    %567 = vdwg.mxu0
    %v568 = vadd.f32 %v492, %v565
    %v569 = vxor.u32 %v568, 2147483648
    %v570 = vmul.f32 %v569, 1.442695
    %v571 = vpow.pop %v570
    %v572 = vadd.f32 %v571, 1.0
    %v573 = vrcp.pop %v572
    %v574 = vmul.f32 1.0, %v573
    %v575 = vmul.f32 %v574, 2.0
    %v576 = vsub.f32 %v575, 1.0
    %v577 = vmul.f32 %v574, %v484
    %579 = vrot.lane.b32.xlu0 %v576, 64
    %v580 = vpop.permute.xlu0 %579
    %v582 = vmul.f32 %v574, %v580
    %584 = vrot.lane.b32.xlu0 %v582, 32
    %v585 = vpop.permute.xlu0 %584
    %v587 = vadd.f32 %v577, %v585
    %v588 = vtanh.pop %v587
    %590 = vrot.lane.b32.xlu0 %v588, 64
    %v591 = vpop.permute.xlu0 %590
    %v593 = vmul.f32 %v574, %v591
    %s594 = scalar_lea.vmem [#allocation2], 32
    %v595 = vld [vmem:[%s594] sm:$0xff]
    %597 = vrot.lane.b32.xlu0 %v593, 32
    %v598 = vpop.permute.xlu0 %597
    %v599 = vsel %vm43, %v598, 0
    %601 = vmatprep.subr.mxu0 0.0
    %602 = vmatpush1.msra.mxu0 0.0
    %603 = vmatprep.subr.mxu0 0.0
    %604 = vmatpush1.msra.mxu0 0.0
    %605 = vmatprep.subr.mxu0 0.0
    %606 = vmatpush1.msra.mxu0 0.0
    %607 = vmatprep.subr.mxu0 0.0
    %608 = vmatpush1.msra.mxu0 0.0
    %609 = vmatprep.subr.mxu0 0.0
    %610 = vmatpush1.msra.mxu0 0.0
    %611 = vmatprep.subr.mxu0 0.0
    %612 = vmatpush1.msra.mxu0 0.0
    %613 = vmatprep.subr.mxu0 0.0
    %614 = vmatpush1.msra.mxu0 0.0
    %615 = vmatprep.subr.mxu0 0.0
    %616 = vmatpush1.msra.mxu0 0.0
    %617 = vmatprep.subr.mxu0 0.0
    %618 = vmatpush1.msra.mxu0 0.0
    %619 = vmatprep.subr.mxu0 0.0
    %620 = vmatpush1.msra.mxu0 0.0
    %621 = vmatprep.subr.mxu0 0.0
    %622 = vmatpush1.msra.mxu0 0.0
    %623 = vmatprep.subr.mxu0 0.0
    %624 = vmatpush1.msra.mxu0 0.0
    %625 = vmatprep.subr.mxu0 0.0
    %626 = vmatpush1.msra.mxu0 %v185
    %627 = vmatprep.subr.mxu0 0.0
    %628 = vmatpush1.msra.mxu0 %v184
    %629 = vmatprep.subr.mxu0 0.0
    %630 = vmatpush1.msra.mxu0 %v183
    %631 = vmatprep.subr.mxu0 0.0
    %632 = vmatpush1.msra.mxu0 %v182
    %633 = vmatprep.subr.mxu0 0.0
    %634 = vmatpush2.msra.mxu0 0.0
    %635 = vmatprep.subr.mxu0 0.0
    %636 = vmatpush2.msra.mxu0 0.0
    %637 = vmatprep.subr.mxu0 0.0
    %638 = vmatpush2.msra.mxu0 0.0
    %639 = vmatprep.subr.mxu0 0.0
    %640 = vmatpush2.msra.mxu0 0.0
    %641 = vmatprep.subr.mxu0 0.0
    %642 = vmatpush2.msra.mxu0 0.0
    %643 = vmatprep.subr.mxu0 0.0
    %644 = vmatpush2.msra.mxu0 0.0
    %645 = vmatprep.subr.mxu0 0.0
    %646 = vmatpush2.msra.mxu0 0.0
    %647 = vmatprep.subr.mxu0 0.0
    %648 = vmatpush2.msra.mxu0 0.0
    %649 = vmatprep.subr.mxu0 0.0
    %650 = vmatpush2.msra.mxu0 0.0
    %651 = vmatprep.subr.mxu0 0.0
    %652 = vmatpush2.msra.mxu0 0.0
    %653 = vmatprep.subr.mxu0 0.0
    %654 = vmatpush2.msra.mxu0 0.0
    %655 = vmatprep.subr.mxu0 0.0
    %656 = vmatpush2.msra.mxu0 0.0
    %657 = vmatprep.subr.mxu0 0.0
    %658 = vmatpush2.msra.mxu0 0.0
    %659 = vmatprep.subr.mxu0 0.0
    %660 = vmatpush2.msra.mxu0 0.0
    %661 = vmatprep.subr.mxu0 0.0
    %662 = vmatpush2.msra.mxu0 0.0
    %663 = vmatprep.subr.mxu0 0.0
    %664 = vmatpush2.msra.mxu0 0.0
    %665 = vmatprep.mubr.f32.mxu0 0.0
    %666 = vmatmul.mubr.f32.gmra.mxu0 %v599
    %v667 = vpop.f32.mrf.mxu0
    %v668 = vadd.f32 0.0, %v667
    %v669 = vpop.f32.mrf.mxu0
    %670 = vdwg.mxu0
    %v671 = vadd.f32 %v595, %v668
    %v672 = vxor.u32 %v671, 2147483648
    %v673 = vmul.f32 %v672, 1.442695
    %v674 = vpow.pop %v673
    %v675 = vadd.f32 %v674, 1.0
    %v676 = vrcp.pop %v675
    %v677 = vmul.f32 1.0, %v676
    %v678 = vmul.f32 %v677, 2.0
    %v679 = vsub.f32 %v678, 1.0
    %v680 = vmul.f32 %v677, %v587
    %682 = vrot.lane.b32.xlu0 %v679, 64
    %v683 = vpop.permute.xlu0 %682
    %v685 = vmul.f32 %v677, %v683
    %687 = vrot.lane.b32.xlu0 %v685, 32
    %v688 = vpop.permute.xlu0 %687
    %v690 = vadd.f32 %v680, %v688
    %v691 = vtanh.pop %v690
    %693 = vrot.lane.b32.xlu0 %v691, 64
    %v694 = vpop.permute.xlu0 %693
    %v696 = vmul.f32 %v677, %v694
    %s697 = scalar_lea.vmem [#allocation2], 40
    %v698 = vld [vmem:[%s697] sm:$0xff]
    %700 = vrot.lane.b32.xlu0 %v696, 32
    %v701 = vpop.permute.xlu0 %700
    %v702 = vsel %vm43, %v701, 0
    %704 = vmatprep.subr.mxu0 0.0
    %705 = vmatpush1.msra.mxu0 0.0
    %706 = vmatprep.subr.mxu0 0.0
    %707 = vmatpush1.msra.mxu0 0.0
    %708 = vmatprep.subr.mxu0 0.0
    %709 = vmatpush1.msra.mxu0 0.0
    %710 = vmatprep.subr.mxu0 0.0
    %711 = vmatpush1.msra.mxu0 0.0
    %712 = vmatprep.subr.mxu0 0.0
    %713 = vmatpush1.msra.mxu0 0.0
    %714 = vmatprep.subr.mxu0 0.0
    %715 = vmatpush1.msra.mxu0 0.0
    %716 = vmatprep.subr.mxu0 0.0
    %717 = vmatpush1.msra.mxu0 0.0
    %718 = vmatprep.subr.mxu0 0.0
    %719 = vmatpush1.msra.mxu0 0.0
    %720 = vmatprep.subr.mxu0 0.0
    %721 = vmatpush1.msra.mxu0 0.0
    %722 = vmatprep.subr.mxu0 0.0
    %723 = vmatpush1.msra.mxu0 0.0
    %724 = vmatprep.subr.mxu0 0.0
    %725 = vmatpush1.msra.mxu0 0.0
    %726 = vmatprep.subr.mxu0 0.0
    %727 = vmatpush1.msra.mxu0 0.0
    %728 = vmatprep.subr.mxu0 0.0
    %729 = vmatpush1.msra.mxu0 %v185
    %730 = vmatprep.subr.mxu0 0.0
    %731 = vmatpush1.msra.mxu0 %v184
    %732 = vmatprep.subr.mxu0 0.0
    %733 = vmatpush1.msra.mxu0 %v183
    %734 = vmatprep.subr.mxu0 0.0
    %735 = vmatpush1.msra.mxu0 %v182
    %736 = vmatprep.subr.mxu0 0.0
    %737 = vmatpush2.msra.mxu0 0.0
    %738 = vmatprep.subr.mxu0 0.0
    %739 = vmatpush2.msra.mxu0 0.0
    %740 = vmatprep.subr.mxu0 0.0
    %741 = vmatpush2.msra.mxu0 0.0
    %742 = vmatprep.subr.mxu0 0.0
    %743 = vmatpush2.msra.mxu0 0.0
    %744 = vmatprep.subr.mxu0 0.0
    %745 = vmatpush2.msra.mxu0 0.0
    %746 = vmatprep.subr.mxu0 0.0
    %747 = vmatpush2.msra.mxu0 0.0
    %748 = vmatprep.subr.mxu0 0.0
    %749 = vmatpush2.msra.mxu0 0.0
    %750 = vmatprep.subr.mxu0 0.0
    %751 = vmatpush2.msra.mxu0 0.0
    %752 = vmatprep.subr.mxu0 0.0
    %753 = vmatpush2.msra.mxu0 0.0
    %754 = vmatprep.subr.mxu0 0.0
    %755 = vmatpush2.msra.mxu0 0.0
    %756 = vmatprep.subr.mxu0 0.0
    %757 = vmatpush2.msra.mxu0 0.0
    %758 = vmatprep.subr.mxu0 0.0
    %759 = vmatpush2.msra.mxu0 0.0
    %760 = vmatprep.subr.mxu0 0.0
    %761 = vmatpush2.msra.mxu0 0.0
    %762 = vmatprep.subr.mxu0 0.0
    %763 = vmatpush2.msra.mxu0 0.0
    %764 = vmatprep.subr.mxu0 0.0
    %765 = vmatpush2.msra.mxu0 0.0
    %766 = vmatprep.subr.mxu0 0.0
    %767 = vmatpush2.msra.mxu0 0.0
    %768 = vmatprep.mubr.f32.mxu0 0.0
    %769 = vmatmul.mubr.f32.gmra.mxu0 %v702
    %v770 = vpop.f32.mrf.mxu0
    %v771 = vadd.f32 0.0, %v770
    %v772 = vpop.f32.mrf.mxu0
    %773 = vdwg.mxu0
    %v774 = vadd.f32 %v698, %v771
    %v775 = vxor.u32 %v774, 2147483648
    %v776 = vmul.f32 %v775, 1.442695
    %v777 = vpow.pop %v776
    %v778 = vadd.f32 %v777, 1.0
    %v779 = vrcp.pop %v778
    %v780 = vmul.f32 1.0, %v779
    %v781 = vmul.f32 %v780, 2.0
    %v782 = vsub.f32 %v781, 1.0
    %v783 = vmul.f32 %v780, %v690
    %785 = vrot.lane.b32.xlu0 %v782, 64
    %v786 = vpop.permute.xlu0 %785
    %v788 = vmul.f32 %v780, %v786
    %790 = vrot.lane.b32.xlu0 %v788, 32
    %v791 = vpop.permute.xlu0 %790
    %v793 = vadd.f32 %v783, %v791
    %v794 = vtanh.pop %v793
    %796 = vrot.lane.b32.xlu0 %v794, 64
    %v797 = vpop.permute.xlu0 %796
    %v799 = vmul.f32 %v780, %v797
    %s800 = scalar_lea.vmem [#allocation2], 48
    %v801 = vld [vmem:[%s800] sm:$0xff]
    %803 = vrot.lane.b32.xlu0 %v799, 32
    %v804 = vpop.permute.xlu0 %803
    %v805 = vsel %vm43, %v804, 0
    %807 = vmatprep.subr.mxu0 0.0
    %808 = vmatpush1.msra.mxu0 0.0
    %809 = vmatprep.subr.mxu0 0.0
    %810 = vmatpush1.msra.mxu0 0.0
    %811 = vmatprep.subr.mxu0 0.0
    %812 = vmatpush1.msra.mxu0 0.0
    %813 = vmatprep.subr.mxu0 0.0
    %814 = vmatpush1.msra.mxu0 0.0
    %815 = vmatprep.subr.mxu0 0.0
    %816 = vmatpush1.msra.mxu0 0.0
    %817 = vmatprep.subr.mxu0 0.0
    %818 = vmatpush1.msra.mxu0 0.0
    %819 = vmatprep.subr.mxu0 0.0
    %820 = vmatpush1.msra.mxu0 0.0
    %821 = vmatprep.subr.mxu0 0.0
    %822 = vmatpush1.msra.mxu0 0.0
    %823 = vmatprep.subr.mxu0 0.0
    %824 = vmatpush1.msra.mxu0 0.0
    %825 = vmatprep.subr.mxu0 0.0
    %826 = vmatpush1.msra.mxu0 0.0
    %827 = vmatprep.subr.mxu0 0.0
    %828 = vmatpush1.msra.mxu0 0.0
    %829 = vmatprep.subr.mxu0 0.0
    %830 = vmatpush1.msra.mxu0 0.0
    %831 = vmatprep.subr.mxu0 0.0
    %832 = vmatpush1.msra.mxu0 %v185
    %833 = vmatprep.subr.mxu0 0.0
    %834 = vmatpush1.msra.mxu0 %v184
    %835 = vmatprep.subr.mxu0 0.0
    %836 = vmatpush1.msra.mxu0 %v183
    %837 = vmatprep.subr.mxu0 0.0
    %838 = vmatpush1.msra.mxu0 %v182
    %839 = vmatprep.subr.mxu0 0.0
    %840 = vmatpush2.msra.mxu0 0.0
    %841 = vmatprep.subr.mxu0 0.0
    %842 = vmatpush2.msra.mxu0 0.0
    %843 = vmatprep.subr.mxu0 0.0
    %844 = vmatpush2.msra.mxu0 0.0
    %845 = vmatprep.subr.mxu0 0.0
    %846 = vmatpush2.msra.mxu0 0.0
    %847 = vmatprep.subr.mxu0 0.0
    %848 = vmatpush2.msra.mxu0 0.0
    %849 = vmatprep.subr.mxu0 0.0
    %850 = vmatpush2.msra.mxu0 0.0
    %851 = vmatprep.subr.mxu0 0.0
    %852 = vmatpush2.msra.mxu0 0.0
    %853 = vmatprep.subr.mxu0 0.0
    %854 = vmatpush2.msra.mxu0 0.0
    %855 = vmatprep.subr.mxu0 0.0
    %856 = vmatpush2.msra.mxu0 0.0
    %857 = vmatprep.subr.mxu0 0.0
    %858 = vmatpush2.msra.mxu0 0.0
    %859 = vmatprep.subr.mxu0 0.0
    %860 = vmatpush2.msra.mxu0 0.0
    %861 = vmatprep.subr.mxu0 0.0
    %862 = vmatpush2.msra.mxu0 0.0
    %863 = vmatprep.subr.mxu0 0.0
    %864 = vmatpush2.msra.mxu0 0.0
    %865 = vmatprep.subr.mxu0 0.0
    %866 = vmatpush2.msra.mxu0 0.0
    %867 = vmatprep.subr.mxu0 0.0
    %868 = vmatpush2.msra.mxu0 0.0
    %869 = vmatprep.subr.mxu0 0.0
    %870 = vmatpush2.msra.mxu0 0.0
    %871 = vmatprep.mubr.f32.mxu0 0.0
    %872 = vmatmul.mubr.f32.gmra.mxu0 %v805
    %v873 = vpop.f32.mrf.mxu0
    %v874 = vadd.f32 0.0, %v873
    %v875 = vpop.f32.mrf.mxu0
    %876 = vdwg.mxu0
    %v877 = vadd.f32 %v801, %v874
    %v878 = vxor.u32 %v877, 2147483648
    %v879 = vmul.f32 %v878, 1.442695
    %v880 = vpow.pop %v879
    %v881 = vadd.f32 %v880, 1.0
    %v882 = vrcp.pop %v881
    %v883 = vmul.f32 1.0, %v882
    %v884 = vmul.f32 %v883, 2.0
    %v885 = vsub.f32 %v884, 1.0
    %v886 = vmul.f32 %v883, %v793
    %888 = vrot.lane.b32.xlu0 %v885, 64
    %v889 = vpop.permute.xlu0 %888
    %v891 = vmul.f32 %v883, %v889
    %893 = vrot.lane.b32.xlu0 %v891, 32
    %v894 = vpop.permute.xlu0 %893
    %v896 = vadd.f32 %v886, %v894
    %v897 = vtanh.pop %v896
    %899 = vrot.lane.b32.xlu0 %v897, 64
    %v900 = vpop.permute.xlu0 %899
    %v902 = vmul.f32 %v883, %v900
    %s903 = scalar_lea.vmem [#allocation2], 56
    %v904 = vld [vmem:[%s903] sm:$0xff]
    %906 = vrot.lane.b32.xlu0 %v902, 32
    %v907 = vpop.permute.xlu0 %906
    %v908 = vsel %vm43, %v907, 0
    %910 = vmatprep.subr.mxu0 0.0
    %911 = vmatpush1.msra.mxu0 0.0
    %912 = vmatprep.subr.mxu0 0.0
    %913 = vmatpush1.msra.mxu0 0.0
    %914 = vmatprep.subr.mxu0 0.0
    %915 = vmatpush1.msra.mxu0 0.0
    %916 = vmatprep.subr.mxu0 0.0
    %917 = vmatpush1.msra.mxu0 0.0
    %918 = vmatprep.subr.mxu0 0.0
    %919 = vmatpush1.msra.mxu0 0.0
    %920 = vmatprep.subr.mxu0 0.0
    %921 = vmatpush1.msra.mxu0 0.0
    %922 = vmatprep.subr.mxu0 0.0
    %923 = vmatpush1.msra.mxu0 0.0
    %924 = vmatprep.subr.mxu0 0.0
    %925 = vmatpush1.msra.mxu0 0.0
    %926 = vmatprep.subr.mxu0 0.0
    %927 = vmatpush1.msra.mxu0 0.0
    %928 = vmatprep.subr.mxu0 0.0
    %929 = vmatpush1.msra.mxu0 0.0
    %930 = vmatprep.subr.mxu0 0.0
    %931 = vmatpush1.msra.mxu0 0.0
    %932 = vmatprep.subr.mxu0 0.0
    %933 = vmatpush1.msra.mxu0 0.0
    %934 = vmatprep.subr.mxu0 0.0
    %935 = vmatpush1.msra.mxu0 %v185
    %936 = vmatprep.subr.mxu0 0.0
    %937 = vmatpush1.msra.mxu0 %v184
    %938 = vmatprep.subr.mxu0 0.0
    %939 = vmatpush1.msra.mxu0 %v183
    %940 = vmatprep.subr.mxu0 0.0
    %941 = vmatpush1.msra.mxu0 %v182
    %942 = vmatprep.subr.mxu0 0.0
    %943 = vmatpush2.msra.mxu0 0.0
    %944 = vmatprep.subr.mxu0 0.0
    %945 = vmatpush2.msra.mxu0 0.0
    %946 = vmatprep.subr.mxu0 0.0
    %947 = vmatpush2.msra.mxu0 0.0
    %948 = vmatprep.subr.mxu0 0.0
    %949 = vmatpush2.msra.mxu0 0.0
    %950 = vmatprep.subr.mxu0 0.0
    %951 = vmatpush2.msra.mxu0 0.0
    %952 = vmatprep.subr.mxu0 0.0
    %953 = vmatpush2.msra.mxu0 0.0
    %954 = vmatprep.subr.mxu0 0.0
    %955 = vmatpush2.msra.mxu0 0.0
    %956 = vmatprep.subr.mxu0 0.0
    %957 = vmatpush2.msra.mxu0 0.0
    %958 = vmatprep.subr.mxu0 0.0
    %959 = vmatpush2.msra.mxu0 0.0
    %960 = vmatprep.subr.mxu0 0.0
    %961 = vmatpush2.msra.mxu0 0.0
    %962 = vmatprep.subr.mxu0 0.0
    %963 = vmatpush2.msra.mxu0 0.0
    %964 = vmatprep.subr.mxu0 0.0
    %965 = vmatpush2.msra.mxu0 0.0
    %966 = vmatprep.subr.mxu0 0.0
    %967 = vmatpush2.msra.mxu0 0.0
    %968 = vmatprep.subr.mxu0 0.0
    %969 = vmatpush2.msra.mxu0 0.0
    %970 = vmatprep.subr.mxu0 0.0
    %971 = vmatpush2.msra.mxu0 0.0
    %972 = vmatprep.subr.mxu0 0.0
    %973 = vmatpush2.msra.mxu0 0.0
    %974 = vmatprep.mubr.f32.mxu0 0.0
    %975 = vmatmul.mubr.f32.gmra.mxu0 %v908
    %v976 = vpop.f32.mrf.mxu0
    %v977 = vadd.f32 0.0, %v976
    %v978 = vpop.f32.mrf.mxu0
    %979 = vdwg.mxu0
    %v980 = vadd.f32 %v904, %v977
    %v981 = vxor.u32 %v980, 2147483648
    %v982 = vmul.f32 %v981, 1.442695
    %v983 = vpow.pop %v982
    %v984 = vadd.f32 %v983, 1.0
    %v985 = vrcp.pop %v984
    %v986 = vmul.f32 1.0, %v985
    %v987 = vmul.f32 %v986, 2.0
    %v988 = vsub.f32 %v987, 1.0
    %v989 = vmul.f32 %v986, %v896
    %991 = vrot.lane.b32.xlu0 %v988, 64
    %v992 = vpop.permute.xlu0 %991
    %v994 = vmul.f32 %v986, %v992
    %996 = vrot.lane.b32.xlu0 %v994, 32
    %v997 = vpop.permute.xlu0 %996
    %v999 = vadd.f32 %v989, %v997
    %v1000 = vtanh.pop %v999
    %1002 = vrot.lane.b32.xlu0 %v1000, 64
    %v1003 = vpop.permute.xlu0 %1002
    %v1005 = vmul.f32 %v986, %v1003
    %v1006 = vld [vmem:[%s4] sm:$0xff]
    %v1007 = vld [vmem:[%s4 + $0x8] sm:$0xff]
    %v1008 = vld [vmem:[%s4 + $0x10] sm:$0xff]
    %v1009 = vld [vmem:[%s4 + $0x18] sm:$0xff]
    %v1010 = vld [vmem:[%s5] sm:$0x1]
    %v1012 = vlaneseq
    %v1013 = vshrl.u32 %v1012, 7
    %v1014 = vsub.s32 0, %v1013
    %v1015 = vrot.slane %v1010, %v1014
    %1018 = vrot.lane.b32.xlu0 %v1005, 32
    %v1019 = vpop.permute.xlu0 %1018
    %v1020 = vsel %vm43, %v1019, 0
    %1022 = vmatprep.subr.mxu0 0.0
    %1023 = vmatpush1.msra.mxu0 0.0
    %1024 = vmatprep.subr.mxu0 0.0
    %1025 = vmatpush1.msra.mxu0 0.0
    %1026 = vmatprep.subr.mxu0 0.0
    %1027 = vmatpush1.msra.mxu0 0.0
    %1028 = vmatprep.subr.mxu0 0.0
    %1029 = vmatpush1.msra.mxu0 0.0
    %1030 = vmatprep.subr.mxu0 0.0
    %1031 = vmatpush1.msra.mxu0 0.0
    %1032 = vmatprep.subr.mxu0 0.0
    %1033 = vmatpush1.msra.mxu0 0.0
    %1034 = vmatprep.subr.mxu0 0.0
    %1035 = vmatpush1.msra.mxu0 0.0
    %1036 = vmatprep.subr.mxu0 0.0
    %1037 = vmatpush1.msra.mxu0 0.0
    %1038 = vmatprep.subr.mxu0 0.0
    %1039 = vmatpush1.msra.mxu0 0.0
    %1040 = vmatprep.subr.mxu0 0.0
    %1041 = vmatpush1.msra.mxu0 0.0
    %1042 = vmatprep.subr.mxu0 0.0
    %1043 = vmatpush1.msra.mxu0 0.0
    %1044 = vmatprep.subr.mxu0 0.0
    %1045 = vmatpush1.msra.mxu0 0.0
    %1046 = vmatprep.subr.mxu0 0.0
    %1047 = vmatpush1.msra.mxu0 %v1009
    %1048 = vmatprep.subr.mxu0 0.0
    %1049 = vmatpush1.msra.mxu0 %v1008
    %1050 = vmatprep.subr.mxu0 0.0
    %1051 = vmatpush1.msra.mxu0 %v1007
    %1052 = vmatprep.subr.mxu0 0.0
    %1053 = vmatpush1.msra.mxu0 %v1006
    %1054 = vmatprep.subr.mxu0 0.0
    %1055 = vmatpush2.msra.mxu0 0.0
    %1056 = vmatprep.subr.mxu0 0.0
    %1057 = vmatpush2.msra.mxu0 0.0
    %1058 = vmatprep.subr.mxu0 0.0
    %1059 = vmatpush2.msra.mxu0 0.0
    %1060 = vmatprep.subr.mxu0 0.0
    %1061 = vmatpush2.msra.mxu0 0.0
    %1062 = vmatprep.subr.mxu0 0.0
    %1063 = vmatpush2.msra.mxu0 0.0
    %1064 = vmatprep.subr.mxu0 0.0
    %1065 = vmatpush2.msra.mxu0 0.0
    %1066 = vmatprep.subr.mxu0 0.0
    %1067 = vmatpush2.msra.mxu0 0.0
    %1068 = vmatprep.subr.mxu0 0.0
    %1069 = vmatpush2.msra.mxu0 0.0
    %1070 = vmatprep.subr.mxu0 0.0
    %1071 = vmatpush2.msra.mxu0 0.0
    %1072 = vmatprep.subr.mxu0 0.0
    %1073 = vmatpush2.msra.mxu0 0.0
    %1074 = vmatprep.subr.mxu0 0.0
    %1075 = vmatpush2.msra.mxu0 0.0
    %1076 = vmatprep.subr.mxu0 0.0
    %1077 = vmatpush2.msra.mxu0 0.0
    %1078 = vmatprep.subr.mxu0 0.0
    %1079 = vmatpush2.msra.mxu0 0.0
    %1080 = vmatprep.subr.mxu0 0.0
    %1081 = vmatpush2.msra.mxu0 0.0
    %1082 = vmatprep.subr.mxu0 0.0
    %1083 = vmatpush2.msra.mxu0 0.0
    %1084 = vmatprep.subr.mxu0 0.0
    %1085 = vmatpush2.msra.mxu0 0.0
    %1086 = vmatprep.mubr.f32.mxu0 0.0
    %1087 = vmatmul.mubr.f32.gmra.mxu0 %v1020
    %v1088 = vpop.f32.mrf.mxu0
    %v1089 = vadd.f32 %v1015, %v1088
    %v1090 = vpop.f32.mrf.mxu0
    %1091 = vdwg.mxu0
    %vm1092 = vcmask 64512
    %1093 = vst.msk [vmem:[#allocation3] sm:$0xff] %vm1092, %v1089
    // Predicated region
    $region26: #{tpu_custom_call.1} parent=1 // pred_check
      _
    $region27: #{tpu_custom_call.1} parent=1 // pred_check_branch
      %1095 = sbr.rel (0) target = $region29
    $region28: #{tpu_custom_call.1} parent=1 // pred_region
      %s1097 = ssub.s32 128, 128
      %1098 = vsyncadd [#allocation4], %s1097
      %s1100 = sshll.u32 [#allocation3], 4
      %s1101 = int_to_ptr.vmem [resolvable:$true] %s1100
      %1103 = dma.vmem_to_hbm [thread:$0]  %s1101, 128, %s6, [#allocation4]
    $region29: #{tpu_custom_call.1} parent=1 // pred_fallthru
      _
    // Predicated region
    $region30: #{tpu_custom_call.1} parent=1 // pred_check
      _
    $region31: #{tpu_custom_call.1} parent=1 // pred_check_branch
      %1105 = sbr.rel (0) target = $region33
    $region32: #{tpu_custom_call.1} parent=1 // pred_region
      %1106 = dma.done [#allocation4], 128
    $region33: #{tpu_custom_call.1} parent=1 // pred_fallthru
      _
    %1107 = vsyncpa [#allocation4], 1

</llo_original>
